<compile_context>
chip_gen: v7x
topology: tpu7x:2x2x1
jax: 0.10.0
libtpu: 0.0.40
codegen_flags: <defaults>
</compile_context>

<pallas_src>
import jax
import jax.numpy as jnp
from jax import lax
from jax.experimental import pallas as pl
from jax.experimental.pallas import tpu as pltpu

ALPHA = (10.0, 8.0, 25.0, 60.0, 300.0, 400.0, 1.0, 10.0)  # FocalLoss.__init__ default
GAMMA = 2.0                                               # statically 2 -> q*q
IGNORE_INDEX = -1


def _round_up(x, m):
    return ((x + m - 1) // m) * m


def focal_loss_kernel(alpha_ref, logits_ref, tgt_ref, sum_out, cnt_out, sum_vec, cnt_vec):
    ji = pl.program_id(1)

    @pl.when(ji == 0)
    def _():
        sum_vec[...] = jnp.zeros_like(sum_vec)
        cnt_vec[...] = jnp.zeros_like(cnt_vec)

    x = logits_ref[0].astype(jnp.float32)        # (C, TP)  class on sublanes, pixels on lanes
    t = tgt_ref[0]                               # (1, TP)  int32
    c, tp = x.shape

    class_ids = lax.broadcasted_iota(jnp.int32, (c, tp), 0)
    onehot = class_ids == t                      # (C, TP); all-False for ignore_index / padded px

    # cross_entropy(reduction='none'): logsumexp(x) - x[target]
    m = jnp.max(x, axis=0, keepdims=True)        # (1, TP)  XLU
    e = jnp.exp(x - m)                           # (C, TP)  single big EUP exp
    s = jnp.sum(e, axis=0, keepdims=True)        # (1, TP)  XLU
    x_t = jnp.sum(jnp.where(onehot, x, 0.0), axis=0, keepdims=True)  # (1, TP)

    ce = jnp.log(s) + m - x_t                    # (1, TP)
    pt = jnp.exp(-ce)                            # (1, TP) EUP exp; no e_t select/reduce, no divide

    # alpha_t via the same onehot; ignore_index (and padded) pixels get alpha_t == 0.
    alpha_t = jnp.sum(jnp.where(onehot, alpha_ref[...], 0.0), axis=0, keepdims=True)

    q = 1.0 - pt
    focal = alpha_t * q * q * ce                 # gamma == 2 -> q*q, no pow

    valid = (t != IGNORE_INDEX).astype(jnp.float32)

    sum_vec[...] += focal
    cnt_vec[...] += valid

    @pl.when(ji == pl.num_programs(1) - 1)
    def _():
        total = jnp.sum(sum_vec[...])
        count = jnp.sum(cnt_vec[...])
        # Full (1,8,128) tile writes -> lane-dense, unmasked stores.
        sum_out[...] = jnp.full(sum_out.shape, total, dtype=jnp.float32)
        cnt_out[...] = jnp.full(cnt_out.shape, count, dtype=jnp.float32)


def focal_loss(logits_nchw, targets_nhw, *, alpha=ALPHA, tp_lane=65536):
    """reduction='mean' focal loss. logits: (N,C,H,W) f32 or bf16; targets: (N,H,W) int."""
    n, c, h, w = logits_nchw.shape
    hw = h * w

    alpha_col = jnp.asarray(alpha, dtype=jnp.float32).reshape(c, 1)

    # Free reshapes (no transpose): class stays on the second axis (sublanes),
    # pixels become the last (lane) axis.
    logits = logits_nchw.reshape(n, c, hw)
    targets = targets_nhw.reshape(n, 1, hw).astype(jnp.int32)

    # Lane tile: multiple of 128, capped by the (rounded-up) pixel count.
    tp = min(_round_up(tp_lane, 128), _round_up(hw, 128))
    hw_pad = _round_up(hw, tp)
    if hw_pad != hw:
        pad = hw_pad - hw
        logits = jnp.pad(logits, ((0, 0), (0, 0), (0, pad)))
        targets = jnp.pad(targets, ((0, 0), (0, 0), (0, pad)),
                          constant_values=IGNORE_INDEX)
    num_j = hw_pad // tp

    sums, cnts = pl.pallas_call(
        focal_loss_kernel,
        out_shape=(
            jax.ShapeDtypeStruct((n, 8, 128), jnp.float32),   # per-batch loss sums
            jax.ShapeDtypeStruct((n, 8, 128), jnp.float32),   # per-batch valid counts
        ),
        grid_spec=pltpu.PrefetchScalarGridSpec(
            num_scalar_prefetch=0,
            grid=(n, num_j),                                  # reduction axis (ji) last
            in_specs=[
                pl.BlockSpec((c, 1), lambda ni, ji: (0, 0)),           # alpha table
                pl.BlockSpec((1, c, tp), lambda ni, ji: (ni, 0, ji)),  # logits
                pl.BlockSpec((1, 1, tp), lambda ni, ji: (ni, 0, ji)),  # targets
            ],
            out_specs=[
                pl.BlockSpec((1, 8, 128), lambda ni, ji: (ni, 0, 0)),
                pl.BlockSpec((1, 8, 128), lambda ni, ji: (ni, 0, 0)),
            ],
            scratch_shapes=[
                pltpu.VMEM((1, tp), jnp.float32),  # running focal-loss partial sums
                pltpu.VMEM((1, tp), jnp.float32),  # running valid-pixel counts
            ],
        ),
        compiler_params=pltpu.CompilerParams(
            # Batch axis parallel -> both v7x TensorCores; per-ni outputs + per-core scratch
            # keep it race-free. Neutral on single-TC v5e/v6e.
            dimension_semantics=("parallel", "arbitrary"),
            # 64K-lane tiles need ~13 MiB (f32 inputs, 8-sublane-padded scratch); 32 MiB is
            # safe on v5e/v6e/v7x and leaves headroom up to ~128K lanes.
            vmem_limit_bytes=32 * 1024 * 1024,
        ),
    )(alpha_col, logits, targets)

    total = jnp.sum(sums[:, 0, 0])
    count = jnp.sum(cnts[:, 0, 0])
    # reduction='mean': sum / valid_count.clamp(min=1)
    return total / jnp.maximum(count, 1.0)


def focal_loss_reference(logits_nchw, targets_nhw):
    """Pure-JAX reference mirroring the PyTorch forward."""
    n, c, h, w = logits_nchw.shape
    x = jnp.transpose(logits_nchw, (0, 2, 3, 1)).reshape(-1, c).astype(jnp.float32)
    t = targets_nhw.reshape(-1).astype(jnp.int32)
    lse = jax.scipy.special.logsumexp(x, axis=-1)
    tc = jnp.clip(t, 0, c - 1)
    ce = lse - jnp.take_along_axis(x, tc[:, None], axis=-1)[:, 0]
    valid = t != IGNORE_INDEX
    ce = jnp.where(valid, ce, 0.0)
    pt = jnp.exp(-ce)
    alpha = jnp.asarray(ALPHA, dtype=jnp.float32)
    alpha_t = jnp.where(valid, alpha[tc], 0.0)
    focal = alpha_t * (1.0 - pt) ** GAMMA * ce
    focal = jnp.where(valid, focal, 0.0)
    return jnp.sum(focal) / jnp.maximum(jnp.sum(valid.astype(jnp.float32)), 1.0)


if __name__ == "__main__":
    key = jax.random.PRNGKey(0)
    k1, k2 = jax.random.split(key)

    N, C, H, W = 2, 8, 16, 16  # C must match len(alpha) == 8
    logits = jax.random.normal(k1, (N, C, H, W), dtype=jnp.float32)
    # targets in [-1, 7]; -1 entries exercise ignore_index handling
    targets = jax.random.randint(k2, (N, H, W), minval=-1, maxval=C, dtype=jnp.int32)

    loss = focal_loss(logits, targets)
    loss = jax.block_until_ready(loss)

    ref = focal_loss_reference(logits, targets)
    assert jnp.allclose(loss, ref, rtol=1e-5, atol=1e-5), (loss, ref)

    print("KERNEL_OK")
</pallas_src>

<mosaic_0001>
module attributes {stable_mosaic.version = 11 : i64} {
  func.func @focal_loss_kernel(%arg0: i32, %arg1: i32, %arg2: memref<8x1xf32, #tpu.memory_space<vmem>>, %arg3: memref<1x8x256xf32, #tpu.memory_space<vmem>>, %arg4: memref<1x1x256xi32, #tpu.memory_space<vmem>>, %arg5: memref<1x8x128xf32, #tpu.memory_space<vmem>>, %arg6: memref<1x8x128xf32, #tpu.memory_space<vmem>>, %arg7: memref<1x256xf32, #tpu.memory_space<vmem>>, %arg8: memref<1x256xf32, #tpu.memory_space<vmem>>) attributes {dimension_semantics = [#tpu.dimension_semantics<parallel>, #tpu.dimension_semantics<arbitrary>], iteration_bounds = array<i64: 2, 1>, scalar_prefetch = 0 : i64, scratch_operands = 2 : i64, tpu.core_type = #tpu.core_type<tc>, window_params = [{pipeline_mode = #tpu.pipeline_mode<synchronous>, transform_indices = @transform_0, window_bounds = array<i64: 8, 1>}, {transform_indices = @transform_1, window_bounds = array<i64: 1, 8, 256>}, {transform_indices = @transform_2, window_bounds = array<i64: 1, 1, 256>}, {transform_indices = @transform_3, window_bounds = array<i64: 1, 8, 128>}, {transform_indices = @transform_4, window_bounds = array<i64: 1, 8, 128>}]} {
    %c0_i32 = arith.constant 0 : i32
    %0 = arith.cmpi eq, %arg1, %c0_i32 : i32
    %1 = arith.extui %0 : i1 to i32
    %c0_i32_0 = arith.constant 0 : i32
    %2 = arith.cmpi ne, %1, %c0_i32_0 : i32
    scf.if %2 {
      %cst_25 = arith.constant 0.000000e+00 : f32
      %52 = vector.broadcast %cst_25 : f32 to vector<1x256xf32>
      %c0_26 = arith.constant 0 : index
      %c0_27 = arith.constant 0 : index
      %53 = vector.load %arg7[%c0_26, %c0_27] : memref<1x256xf32, #tpu.memory_space<vmem>>, vector<1x256xf32>
      tpu.vector_store %arg7[%c0_26, %c0_27], %52 {strides = array<i32>} : memref<1x256xf32, #tpu.memory_space<vmem>>, vector<1x256xf32>,
      %cst_28 = arith.constant 0.000000e+00 : f32
      %54 = vector.broadcast %cst_28 : f32 to vector<1x256xf32>
      %c0_29 = arith.constant 0 : index
      %c0_30 = arith.constant 0 : index
      %55 = vector.load %arg8[%c0_29, %c0_30] : memref<1x256xf32, #tpu.memory_space<vmem>>, vector<1x256xf32>
      tpu.vector_store %arg8[%c0_29, %c0_30], %54 {strides = array<i32>} : memref<1x256xf32, #tpu.memory_space<vmem>>, vector<1x256xf32>,
    } else {
    }
    %c0 = arith.constant 0 : index
    %c0_1 = arith.constant 0 : index
    %c0_2 = arith.constant 0 : index
    %3 = vector.load %arg3[%c0, %c0_1, %c0_2] : memref<1x8x256xf32, #tpu.memory_space<vmem>>, vector<1x8x256xf32>
    %4 = vector.shape_cast %3 : vector<1x8x256xf32> to vector<8x256xf32>
    %c0_3 = arith.constant 0 : index
    %c0_4 = arith.constant 0 : index
    %c0_5 = arith.constant 0 : index
    %5 = vector.load %arg4[%c0_3, %c0_4, %c0_5] : memref<1x1x256xi32, #tpu.memory_space<vmem>>, vector<1x1x256xi32>
    %6 = vector.shape_cast %5 : vector<1x1x256xi32> to vector<1x256xi32>
    %7 = tpu.iota {dimensions = array<i32: 0>} : vector<8x256xi32>
    %8 = vector.broadcast %6 : vector<1x256xi32> to vector<8x256xi32>
    %9 = arith.cmpi eq, %7, %8 : vector<8x256xi32>
    %cst = arith.constant dense<0xFF800000> : vector<256xf32>
    %10 = vector.multi_reduction <maximumf>, %4, %cst [0] : vector<8x256xf32> to vector<256xf32>
    %11 = vector.shape_cast %10 : vector<256xf32> to vector<1x256xf32>
    %12 = vector.broadcast %11 : vector<1x256xf32> to vector<8x256xf32>
    %13 = arith.subf %4, %12 : vector<8x256xf32>
    %14 = math.exp %13 : vector<8x256xf32>
    %cst_6 = arith.constant dense<0.000000e+00> : vector<256xf32>
    %15 = vector.multi_reduction <add>, %14, %cst_6 [0] : vector<8x256xf32> to vector<256xf32>
    %16 = vector.shape_cast %15 : vector<256xf32> to vector<1x256xf32>
    %cst_7 = arith.constant 0.000000e+00 : f32
    %17 = vector.broadcast %cst_7 : f32 to vector<8x256xf32>
    %18 = arith.select %9, %4, %17 : vector<8x256xi1>, vector<8x256xf32>
    %cst_8 = arith.constant dense<0.000000e+00> : vector<256xf32>
    %19 = vector.multi_reduction <add>, %18, %cst_8 [0] : vector<8x256xf32> to vector<256xf32>
    %20 = vector.shape_cast %19 : vector<256xf32> to vector<1x256xf32>
    %21 = math.log %16 : vector<1x256xf32>
    %22 = arith.addf %21, %11 : vector<1x256xf32>
    %23 = arith.subf %22, %20 : vector<1x256xf32>
    %cst_9 = arith.constant 0.000000e+00 : f32
    %24 = vector.broadcast %cst_9 : f32 to vector<1x256xf32>
    %25 = arith.subf %24, %23 : vector<1x256xf32>
    %26 = math.exp %25 : vector<1x256xf32>
    %c0_10 = arith.constant 0 : index
    %c0_11 = arith.constant 0 : index
    %27 = vector.load %arg2[%c0_10, %c0_11] : memref<8x1xf32, #tpu.memory_space<vmem>>, vector<8x1xf32>
    %cst_12 = arith.constant 0.000000e+00 : f32
    %28 = vector.shape_cast %27 : vector<8x1xf32> to vector<8x1xf32>
    %29 = vector.broadcast %28 : vector<8x1xf32> to vector<8x256xf32>
    %30 = vector.broadcast %cst_12 : f32 to vector<8x256xf32>
    %31 = arith.select %9, %29, %30 : vector<8x256xi1>, vector<8x256xf32>
    %cst_13 = arith.constant dense<0.000000e+00> : vector<256xf32>
    %32 = vector.multi_reduction <add>, %31, %cst_13 [0] : vector<8x256xf32> to vector<256xf32>
    %33 = vector.shape_cast %32 : vector<256xf32> to vector<1x256xf32>
    %cst_14 = arith.constant 1.000000e+00 : f32
    %34 = vector.broadcast %cst_14 : f32 to vector<1x256xf32>
    %35 = arith.subf %34, %26 : vector<1x256xf32>
    %36 = arith.mulf %33, %35 : vector<1x256xf32>
    %37 = arith.mulf %36, %35 : vector<1x256xf32>
    %38 = arith.mulf %37, %23 : vector<1x256xf32>
    %c-1_i32 = arith.constant -1 : i32
    %39 = vector.broadcast %c-1_i32 : i32 to vector<1x256xi32>
    %40 = arith.cmpi ne, %6, %39 : vector<1x256xi32>
    %41 = arith.extui %40 : vector<1x256xi1> to vector<1x256xi32>
    %42 = arith.sitofp %41 : vector<1x256xi32> to vector<1x256xf32>
    %c0_15 = arith.constant 0 : index
    %c0_16 = arith.constant 0 : index
    %43 = vector.load %arg7[%c0_15, %c0_16] : memref<1x256xf32, #tpu.memory_space<vmem>>, vector<1x256xf32>
    %44 = arith.addf %43, %38 : vector<1x256xf32>
    %c0_17 = arith.constant 0 : index
    %c0_18 = arith.constant 0 : index
    %45 = vector.load %arg7[%c0_17, %c0_18] : memref<1x256xf32, #tpu.memory_space<vmem>>, vector<1x256xf32>
    tpu.vector_store %arg7[%c0_17, %c0_18], %44 {strides = array<i32>} : memref<1x256xf32, #tpu.memory_space<vmem>>, vector<1x256xf32>,
    %c0_19 = arith.constant 0 : index
    %c0_20 = arith.constant 0 : index
    %46 = vector.load %arg8[%c0_19, %c0_20] : memref<1x256xf32, #tpu.memory_space<vmem>>, vector<1x256xf32>
    %47 = arith.addf %46, %42 : vector<1x256xf32>
    %c0_21 = arith.constant 0 : index
    %c0_22 = arith.constant 0 : index
    %48 = vector.load %arg8[%c0_21, %c0_22] : memref<1x256xf32, #tpu.memory_space<vmem>>, vector<1x256xf32>
    tpu.vector_store %arg8[%c0_21, %c0_22], %47 {strides = array<i32>} : memref<1x256xf32, #tpu.memory_space<vmem>>, vector<1x256xf32>,
    %c0_i32_23 = arith.constant 0 : i32
    %49 = arith.cmpi eq, %arg1, %c0_i32_23 : i32
    %50 = arith.extui %49 : i1 to i32
    %c0_i32_24 = arith.constant 0 : i32
    %51 = arith.cmpi ne, %50, %c0_i32_24 : i32
    scf.if %51 {
      %c0_25 = arith.constant 0 : index
      %c0_26 = arith.constant 0 : index
      %52 = vector.load %arg7[%c0_25, %c0_26] : memref<1x256xf32, #tpu.memory_space<vmem>>, vector<1x256xf32>
      %53 = vector.shape_cast %52 : vector<1x256xf32> to vector<1x1x256xf32>
      %cst_27 = arith.constant dense<0.000000e+00> : vector<1xf32>
      %54 = vector.multi_reduction <add>, %53, %cst_27 [1, 2] : vector<1x1x256xf32> to vector<1xf32>
      %55 = vector.shape_cast %54 : vector<1xf32> to vector<1x1x1xf32>
      %56 = vector.extract %55[0, 0, 0] : f32 from vector<1x1x1xf32>
      %c0_28 = arith.constant 0 : index
      %c0_29 = arith.constant 0 : index
      %57 = vector.load %arg8[%c0_28, %c0_29] : memref<1x256xf32, #tpu.memory_space<vmem>>, vector<1x256xf32>
      %58 = vector.shape_cast %57 : vector<1x256xf32> to vector<1x1x256xf32>
      %cst_30 = arith.constant dense<0.000000e+00> : vector<1xf32>
      %59 = vector.multi_reduction <add>, %58, %cst_30 [1, 2] : vector<1x1x256xf32> to vector<1xf32>
      %60 = vector.shape_cast %59 : vector<1xf32> to vector<1x1x1xf32>
      %61 = vector.extract %60[0, 0, 0] : f32 from vector<1x1x1xf32>
      %62 = vector.broadcast %56 : f32 to vector<1x8x128xf32>
      %c0_31 = arith.constant 0 : index
      %c0_32 = arith.constant 0 : index
      %c0_33 = arith.constant 0 : index
      %63 = vector.load %arg5[%c0_31, %c0_32, %c0_33] : memref<1x8x128xf32, #tpu.memory_space<vmem>>, vector<1x8x128xf32>
      tpu.vector_store %arg5[%c0_31, %c0_32, %c0_33], %62 {strides = array<i32>} : memref<1x8x128xf32, #tpu.memory_space<vmem>>, vector<1x8x128xf32>,
      %64 = vector.broadcast %61 : f32 to vector<1x8x128xf32>
      %c0_34 = arith.constant 0 : index
      %c0_35 = arith.constant 0 : index
      %c0_36 = arith.constant 0 : index
      %65 = vector.load %arg6[%c0_34, %c0_35, %c0_36] : memref<1x8x128xf32, #tpu.memory_space<vmem>>, vector<1x8x128xf32>
      tpu.vector_store %arg6[%c0_34, %c0_35, %c0_36], %64 {strides = array<i32>} : memref<1x8x128xf32, #tpu.memory_space<vmem>>, vector<1x8x128xf32>,
    } else {
    }
    return
  }
  func.func @transform_0(%arg0: i32, %arg1: i32) -> (i32, i32) {
    %c0_i32 = arith.constant 0 : i32
    %c0_i32_0 = arith.constant 0 : i32
    %c0_i32_1 = arith.constant 0 : i32
    return %c0_i32, %c0_i32_0 : i32, i32
  }
  func.func @transform_1(%arg0: i32, %arg1: i32) -> (i32, i32, i32) {
    %c0_i32 = arith.constant 0 : i32
    %c0_i32_0 = arith.constant 0 : i32
    return %arg0, %c0_i32, %arg1 : i32, i32, i32
  }
  func.func @transform_2(%arg0: i32, %arg1: i32) -> (i32, i32, i32) {
    %c0_i32 = arith.constant 0 : i32
    %c0_i32_0 = arith.constant 0 : i32
    return %arg0, %c0_i32, %arg1 : i32, i32, i32
  }
  func.func @transform_3(%arg0: i32, %arg1: i32) -> (i32, i32, i32) {
    %c0_i32 = arith.constant 0 : i32
    %c0_i32_0 = arith.constant 0 : i32
    %c0_i32_1 = arith.constant 0 : i32
    return %arg0, %c0_i32, %c0_i32_0 : i32, i32, i32
  }
  func.func @transform_4(%arg0: i32, %arg1: i32) -> (i32, i32, i32) {
    %c0_i32 = arith.constant 0 : i32
    %c0_i32_0 = arith.constant 0 : i32
    %c0_i32_1 = arith.constant 0 : i32
    return %arg0, %c0_i32, %c0_i32_0 : i32, i32, i32
  }
}

</mosaic_0001>

<llo_original>
// kernel: tpu_custom_call.1
$region0: #{tpu_custom_call.1}
  #allocation0 [shape = 'u32[]', space=smem, size = 0x4, offset = 0x4, fixed_abs, tag = 'smem constant byte address 0x4 - core index']
  #allocation1 [shape = 'u32[144,128]{1,0:T(1,128)}', space=vmem, size = 0x12000, scoped, tag = 'internal scratch']
  #allocation2 [shape = 'f32[1,256]{1,0:T(1,128)}', space=vmem, size = 0x400, scoped, tag = 'scratch operand']
  #allocation3 [shape = 'f32[1,256]{1,0:T(1,128)}', space=vmem, size = 0x400, scoped, tag = 'scratch operand']
  %s0 = inlined_call_operand.vmem [shape: f32[8,1], index: 0, kind: input, shape index: {}]
  %s1 = inlined_call_operand.hbm [shape: f32[2,8,256], index: 1, kind: input, shape index: {}]
  %s2 = inlined_call_operand.vmem [shape: s32[2,1,256], index: 2, kind: input, shape index: {}]
  %s3 = inlined_call_operand.hbm [shape: f32[2,8,128], index: 3, kind: output, shape index: {0}]
  %s4 = inlined_call_operand.hbm [shape: f32[2,8,128], index: 4, kind: output, shape index: {1}]
  %5 = xla_tuple %s3, %s4
  %s6 = sld [smem:[#allocation0]]
  $region65: #{tpu_custom_call.1} parent=0
    _
  %s8 = ssub.s32 1, %s6
  %s9 = scalar_select 0, %s8, %s6
  $region1: #{tpu_custom_call.1} parent=0
    #allocation4 [shape = 'u8[16384]{0}', space=vmem, size = 0x4000, scoped, tag = 'input window, operand 1']
    #allocation5 [shape = 's32[2]{0}', space=sflag, size = 0x8, scoped, tag = 'scoped memory for tpu_custom_call.1']
    #allocation6 [shape = 's32[2]{0}', space=sflag, size = 0x8, scoped, tag = 'scoped memory for tpu_custom_call.1']
    #allocation7 [shape = 'u8[8192]{0}', space=vmem, size = 0x2000, scoped, tag = 'output window, operand 0']
    #allocation8 [shape = 'u8[8192]{0}', space=vmem, size = 0x2000, scoped, tag = 'output window, operand 1']
    #allocation9 [shape = 's32[2]{0}', space=sflag, size = 0x8, scoped, tag = 'scoped memory for tpu_custom_call.1']
    %10 = vsyncpa [#allocation5], 0
    %s11 = scalar_lea.sflag [#allocation5], 1
    %12 = vsyncpa %s11, 0
    %13 = vsyncpa [#allocation6], 0
    %s14 = scalar_lea.sflag [#allocation6], 1
    %15 = vsyncpa %s14, 0
    %16 = vsyncpa [#allocation9], 0
    %s17 = scalar_lea.sflag [#allocation9], 1
    %18 = vsyncpa %s17, 0
    loop: start=0, step=1, limit=4
    $region2: #{tpu_custom_call.1} parent=1 // loop_pre_header
      _
    $region3: #{tpu_custom_call.1} parent=1 // loop_header
      %s20 = sphi 0, %s24
      %p21 = scmp.ge.s32.totalorder %s20, 4
      %s27 = sphi 0, %s39
      %s28 = sphi 0, %s35
      %s29 = sphi 0, %s27
      %s30 = sphi 0, %s28
      %s31 = sphi 0, %s29
      %s32 = sphi 0, %s30
      %s40 = sphi 0, %s40
      %s42 = sphi 0, %s40
      %s43 = sphi 0, %s42
      %s57 = sphi 0, %s43
      %s65 = sphi 0, %s67
      %s68 = sphi 0, %s65
      %s69 = sphi 0, %s68
      %s85 = sphi 0, %s69
      %s93 = sphi 0, %s95
      %s96 = sphi 0, %s93
      %s97 = sphi 0, %s96
      %s113 = sphi 0, %s97
      %s119 = sphi 0, %s121
      %s122 = sphi 0, %s119
      %s123 = sphi 0, %s122
      %s139 = sphi 0, %s123
      %s145 = sphi 0, %s147
      %s148 = sphi 0, %s145
      %s149 = sphi 0, %s148
      %s165 = sphi 0, %s149
    $region4: #{tpu_custom_call.1} parent=1 // loop_header_branch
      %23 = sbr.rel (%p21) target = $region8
    $region5: #{tpu_custom_call.1} parent=1 // loop_body
      %s25 = ssub.s32 %s20, 1
      %s26 = ssub.s32 %s20, 2
      %s33 = sadd.s32 1, %s28
      %p34 = scmp.ge.s32.totalorder %s33, 1
      %s35 = scalar_select %p34, 0, %s33
      %s36 = sadd.s32 1, %s27
      %s37 = scalar_select %p34, %s36, %s27
      %p38 = scmp.ge.s32.totalorder %s37, 2
      %s39 = scalar_select %p38, 0, %s37
      %s41 = sadd.s32 %s40, 1
      %p44 = scmp.eq.s32.totalorder %s20, 1
      %p45 = scmp.ne.s32.totalorder %s40, %s42
      %p46 = scmp.eq.s32.totalorder %s20, 0
      %p47 = por %p45, %p46
      %p48 = scmp.ne.s32.totalorder %s40, %s42
      %p49 = scmp.eq.s32.totalorder %s25, 1
      %p50 = por %p48, %p49
      %p51 = scmp.ne.s32.totalorder %s42, %s43
      %p52 = scmp.eq.s32.totalorder %s25, 0
      %p53 = por %p51, %p52
      %p54 = scmp.ne.s32.totalorder %s42, %s43
      %p55 = scmp.eq.s32.totalorder %s26, 1
      %p56 = por %p54, %p55
      %p58 = scmp.ne.s32.totalorder %s43, %s57
      %p59 = scmp.eq.s32.totalorder %s26, 0
      %p60 = por %p58, %p59
      %s61 = ssub.s32 %s27, %s39
      %s62 = ssub.s32 %s28, %s35
      %s63 = sor.u32 %s61, %s62
      %p64 = scmp.eq.s32.totalorder %s63, 0
      %s66 = sadd.s32 %s65, 1
      %s67 = scalar_select %p64, %s65, %s66
      %p70 = pneg %p64
      %p71 = scmp.eq.s32.totalorder %s20, 1
      %p72 = por %p70, %p71
      %p73 = scmp.ne.s32.totalorder %s65, %s68
      %p74 = scmp.eq.s32.totalorder %s20, 0
      %p75 = por %p73, %p74
      %p76 = scmp.ne.s32.totalorder %s65, %s68
      %p77 = scmp.eq.s32.totalorder %s25, 1
      %p78 = por %p76, %p77
      %p79 = scmp.ne.s32.totalorder %s68, %s69
      %p80 = scmp.eq.s32.totalorder %s25, 0
      %p81 = por %p79, %p80
      %p82 = scmp.ne.s32.totalorder %s68, %s69
      %p83 = scmp.eq.s32.totalorder %s26, 1
      %p84 = por %p82, %p83
      %p86 = scmp.ne.s32.totalorder %s69, %s85
      %p87 = scmp.eq.s32.totalorder %s26, 0
      %p88 = por %p86, %p87
      %s89 = ssub.s32 %s27, %s39
      %s90 = ssub.s32 %s28, %s35
      %s91 = sor.u32 %s89, %s90
      %p92 = scmp.eq.s32.totalorder %s91, 0
      %s94 = sadd.s32 %s93, 1
      %s95 = scalar_select %p92, %s93, %s94
      %p98 = pneg %p92
      %p99 = scmp.eq.s32.totalorder %s20, 1
      %p100 = por %p98, %p99
      %p101 = scmp.ne.s32.totalorder %s93, %s96
      %p102 = scmp.eq.s32.totalorder %s20, 0
      %p103 = por %p101, %p102
      %p104 = scmp.ne.s32.totalorder %s93, %s96
      %p105 = scmp.eq.s32.totalorder %s25, 1
      %p106 = por %p104, %p105
      %p107 = scmp.ne.s32.totalorder %s96, %s97
      %p108 = scmp.eq.s32.totalorder %s25, 0
      %p109 = por %p107, %p108
      %p110 = scmp.ne.s32.totalorder %s96, %s97
      %p111 = scmp.eq.s32.totalorder %s26, 1
      %p112 = por %p110, %p111
      %p114 = scmp.ne.s32.totalorder %s97, %s113
      %p115 = scmp.eq.s32.totalorder %s26, 0
      %p116 = por %p114, %p115
      %s117 = ssub.s32 %s27, %s39
      %p118 = scmp.eq.s32.totalorder %s117, 0
      %s120 = sadd.s32 %s119, 1
      %s121 = scalar_select %p118, %s119, %s120
      %p124 = pneg %p118
      %p125 = scmp.eq.s32.totalorder %s20, 1
      %p126 = por %p124, %p125
      %p127 = scmp.ne.s32.totalorder %s119, %s122
      %p128 = scmp.eq.s32.totalorder %s20, 0
      %p129 = por %p127, %p128
      %p130 = scmp.ne.s32.totalorder %s119, %s122
      %p131 = scmp.eq.s32.totalorder %s25, 1
      %p132 = por %p130, %p131
      %p133 = scmp.ne.s32.totalorder %s122, %s123
      %p134 = scmp.eq.s32.totalorder %s25, 0
      %p135 = por %p133, %p134
      %p136 = scmp.ne.s32.totalorder %s122, %s123
      %p137 = scmp.eq.s32.totalorder %s26, 1
      %p138 = por %p136, %p137
      %p140 = scmp.ne.s32.totalorder %s123, %s139
      %p141 = scmp.eq.s32.totalorder %s26, 0
      %p142 = por %p140, %p141
      %s143 = ssub.s32 %s27, %s39
      %p144 = scmp.eq.s32.totalorder %s143, 0
      %s146 = sadd.s32 %s145, 1
      %s147 = scalar_select %p144, %s145, %s146
      %p150 = pneg %p144
      %p151 = scmp.eq.s32.totalorder %s20, 1
      %p152 = por %p150, %p151
      %p153 = scmp.ne.s32.totalorder %s145, %s148
      %p154 = scmp.eq.s32.totalorder %s20, 0
      %p155 = por %p153, %p154
      %p156 = scmp.ne.s32.totalorder %s145, %s148
      %p157 = scmp.eq.s32.totalorder %s25, 1
      %p158 = por %p156, %p157
      %p159 = scmp.ne.s32.totalorder %s148, %s149
      %p160 = scmp.eq.s32.totalorder %s25, 0
      %p161 = por %p159, %p160
      %p162 = scmp.ne.s32.totalorder %s148, %s149
      %p163 = scmp.eq.s32.totalorder %s26, 1
      %p164 = por %p162, %p163
      %p166 = scmp.ne.s32.totalorder %s149, %s165
      %p167 = scmp.eq.s32.totalorder %s26, 0
      %p168 = por %p166, %p167
      %p169 = scmp.le.s32.totalorder 1, %s20
      %p170 = scmp.lt.s32.totalorder %s20, 3
      %p171 = pnand %p169, %p170
      %p172 = pneg %p171
      // Predicated region
      $region9: #{tpu_custom_call.1} parent=5 // pred_check
        _
      $region10: #{tpu_custom_call.1} parent=5 // pred_check_branch
        %174 = sbr.rel (%p171) target = $region12
      $region11: #{tpu_custom_call.1} parent=5 // pred_region
        %s175 = ssub.s32 %s20, 1
        // Predicated region
        $region13: #{tpu_custom_call.1} parent=11 // pred_check
          %p176 = pneg %p53
        $region14: #{tpu_custom_call.1} parent=11 // pred_check_branch
          %178 = sbr.rel (%p176) target = $region16
        $region15: #{tpu_custom_call.1} parent=11 // pred_region
          _
        $region16: #{tpu_custom_call.1} parent=11 // pred_fallthru
          _
      $region12: #{tpu_custom_call.1} parent=5 // pred_fallthru
        _
      %p179 = scmp.lt.s32.totalorder %s20, 2
      // Predicated region
      $region17: #{tpu_custom_call.1} parent=5 // pred_check
        %p180 = pneg %p179
      $region18: #{tpu_custom_call.1} parent=5 // pred_check_branch
        %182 = sbr.rel (%p180) target = $region20
      $region19: #{tpu_custom_call.1} parent=5 // pred_region
        // Predicated region
        $region21: #{tpu_custom_call.1} parent=19 // pred_check
          %p183 = pneg %p75
        $region22: #{tpu_custom_call.1} parent=19 // pred_check_branch
          %185 = sbr.rel (%p183) target = $region24
        $region23: #{tpu_custom_call.1} parent=19 // pred_region
          %s186 = sand.u32 %s65, 1
          %s187 = scalar_lea.sflag [#allocation5], %s186
          %s188 = sand.u32 %s65, 1
          %s189 = smul.addr %s188, 16
          %s190 = scalar_lea.vmem [#allocation4], %s189
          %s191 = smul.u32 2, %s28
          %s193 = ssub.s32 256, 256
          %194 = vsyncadd %s187, %s193
          %s195 = smul.addr %s27, 2
          %s196 = sadd.s32 %s191, %s195
          %s197 = smul.addr %s196, 128
          %s198 = scalar_lea.hbm %s1, %s197
          %s200 = sshll.u32 %s190, 4
          %s201 = int_to_ptr.vmem [resolvable:$true] %s200
          %203 = dma.hbm_to_vmem [thread:$0]  %s198, 256, %s201, %s187
        $region24: #{tpu_custom_call.1} parent=19 // pred_fallthru
          _
        // Predicated region
        $region25: #{tpu_custom_call.1} parent=19 // pred_check
          %p204 = pneg %p103
        $region26: #{tpu_custom_call.1} parent=19 // pred_check_branch
          %206 = sbr.rel (%p204) target = $region28
        $region27: #{tpu_custom_call.1} parent=19 // pred_region
          %s207 = smul.u32 2, %s28
          %p208 = scmp.lt.s32.totalorder %s27, 1
          %s209 = scalar_select %p208, %s27, 1
          %p210 = scmp.lt.s32.totalorder %s207, 1
          %s211 = scalar_select %p210, %s207, 1
          %s212 = smul.addr %s209, 2
          %s213 = sadd.s32 %s211, %s212
          %s214 = scalar_lea.vmem %s2, %s213
          %s215 = smul.u32 2, %s28
        $region28: #{tpu_custom_call.1} parent=19 // pred_fallthru
          _
      $region20: #{tpu_custom_call.1} parent=5 // pred_fallthru
        _
      %p216 = scmp.le.s32.totalorder 1, %s20
      %p217 = scmp.lt.s32.totalorder %s20, 3
      %p218 = pnand %p216, %p217
      %p219 = pneg %p218
      // Predicated region
      $region29: #{tpu_custom_call.1} parent=5 // pred_check
        _
      $region30: #{tpu_custom_call.1} parent=5 // pred_check_branch
        %221 = sbr.rel (%p218) target = $region32
      $region31: #{tpu_custom_call.1} parent=5 // pred_region
        %s222 = ssub.s32 %s20, 1
        %s223 = sand.u32 %s68, 1
        %s224 = scalar_lea.sflag [#allocation5], %s223
        %s225 = sand.u32 %s68, 1
        %s226 = smul.addr %s225, 16
        %s227 = scalar_lea.vmem [#allocation4], %s226
        // Predicated region
        $region33: #{tpu_custom_call.1} parent=31 // pred_check
          %p228 = pneg %p81
        $region34: #{tpu_custom_call.1} parent=31 // pred_check_branch
          %230 = sbr.rel (%p228) target = $region36
        $region35: #{tpu_custom_call.1} parent=31 // pred_region
          %231 = dma.done %s224, 256
        $region36: #{tpu_custom_call.1} parent=31 // pred_fallthru
          _
        %p232 = pneg %p53
        %p233 = pneg %p50
        %s234 = sand.u32 %s68, 1
        %s235 = scalar_lea.sflag [#allocation5], %s234
        %s236 = sand.u32 %s68, 1
        %s237 = smul.addr %s236, 16
        %s238 = scalar_lea.vmem [#allocation4], %s237
        %p239 = pneg %p81
        %p240 = pneg %p78
        %s241 = smul.u32 2, %s30
        %p242 = scmp.lt.s32.totalorder %s29, 1
        %s243 = scalar_select %p242, %s29, 1
        %p244 = scmp.lt.s32.totalorder %s241, 1
        %s245 = scalar_select %p244, %s241, 1
        %s246 = smul.addr %s243, 2
        %s247 = sadd.s32 %s245, %s246
        %s248 = scalar_lea.vmem %s2, %s247
        %p249 = pneg %p109
        %p250 = pneg %p106
        %p251 = pneg %p135
        %p252 = pneg %p132
        %s253 = sand.u32 %s122, 1
        %s254 = scalar_lea.sflag [#allocation6], %s253
        %s255 = sand.u32 %s122, 1
        %s256 = smul.addr %s255, 8
        %s257 = scalar_lea.vmem [#allocation7], %s256
        %p258 = pneg %p161
        %p259 = pneg %p158
        %s260 = sand.u32 %s148, 1
        %s261 = scalar_lea.sflag [#allocation9], %s260
        %s262 = sand.u32 %s148, 1
        %s263 = smul.addr %s262, 8
        %s264 = scalar_lea.vmem [#allocation8], %s263
        %s265 = smul.u32 2, %s30
        %s266 = smul.u32 2, %s30
        %p267 = scmp.lt.s32.totalorder %s29, 1
        %s268 = scalar_select %p267, %s29, 1
        %p269 = scmp.lt.s32.totalorder %s266, 1
        %s270 = scalar_select %p269, %s266, 1
        %s271 = smul.addr %s268, 2
        %s272 = sadd.s32 %s270, %s271
        %s273 = scalar_lea.vmem %s2, %s272
        %s274 = smul.u32 2, %s30
        %p275 = scmp.eq.s32.totalorder %s30, 0
        // Predicated region
        $region37: #{tpu_custom_call.1} parent=31 // pred_check
          %p276 = pneg %p275
        $region38: #{tpu_custom_call.1} parent=31 // pred_check_branch
          %278 = sbr.rel (%p276) target = $region40
        $region39: #{tpu_custom_call.1} parent=31 // pred_region
          %v279 = vlaneseq
          %vm280 = vcmp.ge.s32.totalorder %v279, 0
          %vm281 = vcmp.lt.s32.totalorder %v279, 256
          %vm282 = vmand %vm280, %vm281
          %283 = vst.msk [vmem:[#allocation2] sm:$0x3] %vm282, 0.0
          %284 = vst.msk [vmem:[#allocation3] sm:$0x3] %vm282, 0.0
        $region40: #{tpu_custom_call.1} parent=31 // pred_fallthru
          _
        %v285 = vld [vmem:[%s227] sm:$0xff]
        %v286 = vld [vmem:[%s227 + $0x8] sm:$0xff]
        %v287 = vld [vmem:[%s273] sm:$0x3]
        %v288 = vlaneseq
        %v289 = vshrl.u32 %v288, 7
        %v290 = vlaneseq
        %v291 = vshrl.u32 %v290, 7
        %v292 = vsub.s32 0, %v291
        %v293 = vrot.slane %v287, %v292
        %v294 = vlaneseq
        %v295 = vshrl.u32 %v294, 7
        %v296 = vsub.s32 1, %v295
        %v297 = vrot.slane %v287, %v296
        %vm298 = vcmp.eq.s32.totalorder %v289, %v293
        %vm299 = vcmp.eq.s32.totalorder %v289, %v297
        %v300 = vrot.slane %v285, 4
        %v301 = vmax.f32 %v285, %v300
        %v302 = vrot.slane %v301, 2
        %v303 = vmax.f32 %v301, %v302
        %v304 = vrot.slane %v303, 1
        %v305 = vmax.f32 %v303, %v304
        %v306 = vrot.slane %v286, 4
        %v307 = vmax.f32 %v286, %v306
        %v308 = vrot.slane %v307, 2
        %v309 = vmax.f32 %v307, %v308
        %v310 = vrot.slane %v309, 1
        %v311 = vmax.f32 %v309, %v310
        %v312 = vsub.f32 %v285, %v305
        %v313 = vsub.f32 %v286, %v311
        %v314 = vmul.f32 %v312, 1.442695
        %v315 = vpow.pop %v314
        %v316 = vmul.f32 %v313, 1.442695
        %v317 = vpow.pop %v316
        %v318 = vrot.slane %v315, 4
        %v319 = vadd.f32 %v315, %v318
        %v320 = vrot.slane %v319, 2
        %v321 = vadd.f32 %v319, %v320
        %v322 = vrot.slane %v321, 1
        %v323 = vadd.f32 %v321, %v322
        %v324 = vrot.slane %v317, 4
        %v325 = vadd.f32 %v317, %v324
        %v326 = vrot.slane %v325, 2
        %v327 = vadd.f32 %v325, %v326
        %v328 = vrot.slane %v327, 1
        %v329 = vadd.f32 %v327, %v328
        %v330 = vsel %vm298, %v285, 0.0
        %v331 = vsel %vm299, %v286, 0.0
        %v332 = vrot.slane %v330, 4
        %v333 = vadd.f32 %v330, %v332
        %v334 = vrot.slane %v333, 2
        %v335 = vadd.f32 %v333, %v334
        %v336 = vrot.slane %v335, 1
        %v337 = vadd.f32 %v335, %v336
        %v338 = vrot.slane %v331, 4
        %v339 = vadd.f32 %v331, %v338
        %v340 = vrot.slane %v339, 2
        %v341 = vadd.f32 %v339, %v340
        %v342 = vrot.slane %v341, 1
        %v343 = vadd.f32 %v341, %v342
        %v344 = vlog2.pop %v323
        %v345 = vmul.f32 %v344, 0.6931472
        %v346 = vlog2.pop %v329
        %v347 = vmul.f32 %v346, 0.6931472
        %v348 = vadd.f32 %v345, %v305
        %v349 = vadd.f32 %v347, %v311
        %v350 = vsub.f32 %v348, %v337
        %v351 = vsub.f32 %v349, %v343
        %v352 = vsub.f32 0.0, %v350
        %v353 = vsub.f32 0.0, %v351
        %v354 = vmul.f32 %v352, 1.442695
        %v355 = vpow.pop %v354
        %v356 = vmul.f32 %v353, 1.442695
        %v357 = vpow.pop %v356
        %v358 = vld [vmem:[%s0] sm:$0xff]
        %360 = vset.pattern.permute.xlu0 0
        %361 = vperm.xlu0 %360, %v358
        %v362 = vpop.permute.xlu0 %361
        %v364 = vsel %vm298, %v362, 0.0
        %v365 = vsel %vm299, %v362, 0.0
        %v366 = vrot.slane %v364, 4
        %v367 = vadd.f32 %v364, %v366
        %v368 = vrot.slane %v367, 2
        %v369 = vadd.f32 %v367, %v368
        %v370 = vrot.slane %v369, 1
        %v371 = vadd.f32 %v369, %v370
        %v372 = vrot.slane %v365, 4
        %v373 = vadd.f32 %v365, %v372
        %v374 = vrot.slane %v373, 2
        %v375 = vadd.f32 %v373, %v374
        %v376 = vrot.slane %v375, 1
        %v377 = vadd.f32 %v375, %v376
        %v378 = vsub.f32 1.0, %v355
        %v379 = vsub.f32 1.0, %v357
        %v380 = vmul.f32 %v371, %v378
        %v381 = vmul.f32 %v377, %v379
        %v382 = vmul.f32 %v380, %v378
        %v383 = vmul.f32 %v381, %v379
        %v384 = vmul.f32 %v382, %v350
        %v385 = vmul.f32 %v383, %v351
        %vm386 = vcmp.ne.s32.totalorder %v287, 4294967295
        %v387 = vsel %vm386, 1, 0
        %v388 = vcvt.s32.f32 %v387
        %v389 = vld [vmem:[#allocation2] sm:$0x3]
        %v392 = vcombine.low %v384, %v385
        %v394 = vunpack.c.l.s4 1966171168
        %v395 = vunpack.c.0.s8 %v394
        %v396 = vlaneseq
        %v397 = vshrl.u32 %v396, 7
        %v398 = vsub.s32 %v395, %v397
        %v399 = vrot.slane %v392, %v398
        %v401 = vunpack.c.l.s4 1966171168
        %v402 = vunpack.c.0.s8 %v401
        %v403 = vlaneseq
        %v404 = vshrl.u32 %v403, 7
        %v405 = vsub.s32 %v402, %v404
        %v406 = vrot.slane %v399, %v405
        %v408 = vadd.f32 %v389, %v406
        %v409 = vlaneseq
        %vm410 = vcmp.ge.s32.totalorder %v409, 0
        %vm411 = vcmp.lt.s32.totalorder %v409, 256
        %vm412 = vmand %vm410, %vm411
        %413 = vst.msk [vmem:[#allocation2] sm:$0x3] %vm412, %v408
        %v414 = vld [vmem:[#allocation3] sm:$0x3]
        %v415 = vadd.f32 %v414, %v388
        %416 = vst.msk [vmem:[#allocation3] sm:$0x3] %vm412, %v415
        // Predicated region
        $region41: #{tpu_custom_call.1} parent=31 // pred_check
          %p417 = pneg %p275
        $region42: #{tpu_custom_call.1} parent=31 // pred_check_branch
          %419 = sbr.rel (%p417) target = $region44
        $region43: #{tpu_custom_call.1} parent=31 // pred_region
          %v420 = vld [vmem:[#allocation2] sm:$0x3]
          %v422 = vlaneseq
          %v423 = vshrl.u32 %v422, 7
          %v424 = vsub.s32 0, %v423
          %v425 = vrot.slane %v420, %v424
          %v426 = vlaneseq
          %v427 = vshrl.u32 %v426, 7
          %v428 = vsub.s32 1, %v427
          %v429 = vrot.slane %v420, %v428
          %vm432 = vcmask 1040384
          %v433 = vsel %vm432, %v425, 0.0
          %v434 = vsel %vm432, %v429, 0.0
          %v435 = vadd.f32 %v433, %v434
          %436 = vadd.xlane.f32.xlu0 %v435
          %v437 = vpop.xlane.xlu0 %436
          %v438 = vrot.slane %v437, 4
          %v439 = vadd.f32 %v437, %v438
          %v440 = vrot.slane %v439, 2
          %v441 = vadd.f32 %v439, %v440
          %v442 = vrot.slane %v441, 1
          %v443 = vadd.f32 %v441, %v442
          %s444 = vtos %v443
          %v445 = vld [vmem:[#allocation3] sm:$0x3]
          %v447 = vlaneseq
          %v448 = vshrl.u32 %v447, 7
          %v449 = vsub.s32 0, %v448
          %v450 = vrot.slane %v445, %v449
          %v451 = vlaneseq
          %v452 = vshrl.u32 %v451, 7
          %v453 = vsub.s32 1, %v452
          %v454 = vrot.slane %v445, %v453
          %v457 = vsel %vm432, %v450, 0.0
          %v458 = vsel %vm432, %v454, 0.0
          %v459 = vadd.f32 %v457, %v458
          %460 = vadd.xlane.f32.xlu0 %v459
          %v461 = vpop.xlane.xlu0 %460
          %v462 = vrot.slane %v461, 4
          %v463 = vadd.f32 %v461, %v462
          %v464 = vrot.slane %v463, 2
          %v465 = vadd.f32 %v463, %v464
          %v466 = vrot.slane %v465, 1
          %v467 = vadd.f32 %v465, %v466
          %s468 = vtos %v467
          %v469 = vstv %s444
          %470 = vst [vmem:[%s257] sm:$0xff] %v469
          %v471 = vstv %s468
          %472 = vst [vmem:[%s264] sm:$0xff] %v471
        $region44: #{tpu_custom_call.1} parent=31 // pred_fallthru
          _
        %s473 = sand.u32 %s122, 1
        %s474 = scalar_lea.sflag [#allocation6], %s473
        %s475 = sand.u32 %s122, 1
        %s476 = smul.addr %s475, 8
        %s477 = scalar_lea.vmem [#allocation7], %s476
        %s478 = sand.u32 %s148, 1
        %s479 = scalar_lea.sflag [#allocation9], %s478
        %s480 = sand.u32 %s148, 1
        %s481 = smul.addr %s480, 8
        %s482 = scalar_lea.vmem [#allocation8], %s481
        // Predicated region
        $region45: #{tpu_custom_call.1} parent=31 // pred_check
          %p483 = pneg %p132
        $region46: #{tpu_custom_call.1} parent=31 // pred_check_branch
          %485 = sbr.rel (%p483) target = $region48
        $region47: #{tpu_custom_call.1} parent=31 // pred_region
          %s487 = ssub.s32 128, 128
          %488 = vsyncadd %s474, %s487
          %s489 = smul.addr %s29, 128
          %s490 = scalar_lea.hbm %s3, %s489
          %s492 = sshll.u32 %s477, 4
          %s493 = int_to_ptr.vmem [resolvable:$true] %s492
          %495 = dma.vmem_to_hbm [thread:$0]  %s493, 128, %s490, %s474
        $region48: #{tpu_custom_call.1} parent=31 // pred_fallthru
          _
        // Predicated region
        $region49: #{tpu_custom_call.1} parent=31 // pred_check
          %p496 = pneg %p158
        $region50: #{tpu_custom_call.1} parent=31 // pred_check_branch
          %498 = sbr.rel (%p496) target = $region52
        $region51: #{tpu_custom_call.1} parent=31 // pred_region
          %s500 = ssub.s32 128, 128
          %501 = vsyncadd %s479, %s500
          %s502 = smul.addr %s29, 128
          %s503 = scalar_lea.hbm %s4, %s502
          %s505 = sshll.u32 %s482, 4
          %s506 = int_to_ptr.vmem [resolvable:$true] %s505
          %508 = dma.vmem_to_hbm [thread:$0]  %s506, 128, %s503, %s479
        $region52: #{tpu_custom_call.1} parent=31 // pred_fallthru
          _
      $region32: #{tpu_custom_call.1} parent=5 // pred_fallthru
        _
      %p509 = scmp.le.s32.totalorder 2, %s20
      // Predicated region
      $region53: #{tpu_custom_call.1} parent=5 // pred_check
        %p510 = pneg %p509
      $region54: #{tpu_custom_call.1} parent=5 // pred_check_branch
        %512 = sbr.rel (%p510) target = $region56
      $region55: #{tpu_custom_call.1} parent=5 // pred_region
        %s513 = ssub.s32 %s20, 2
        // Predicated region
        $region57: #{tpu_custom_call.1} parent=55 // pred_check
          %p514 = pneg %p138
        $region58: #{tpu_custom_call.1} parent=55 // pred_check_branch
          %516 = sbr.rel (%p514) target = $region60
        $region59: #{tpu_custom_call.1} parent=55 // pred_region
          %s517 = sand.u32 %s123, 1
          %s518 = scalar_lea.sflag [#allocation6], %s517
          %s519 = sand.u32 %s123, 1
          %s520 = smul.addr %s519, 8
          %s521 = scalar_lea.vmem [#allocation7], %s520
          %522 = dma.done %s518, 128
        $region60: #{tpu_custom_call.1} parent=55 // pred_fallthru
          _
        // Predicated region
        $region61: #{tpu_custom_call.1} parent=55 // pred_check
          %p523 = pneg %p164
        $region62: #{tpu_custom_call.1} parent=55 // pred_check_branch
          %525 = sbr.rel (%p523) target = $region64
        $region63: #{tpu_custom_call.1} parent=55 // pred_region
          %s526 = sand.u32 %s149, 1
          %s527 = scalar_lea.sflag [#allocation9], %s526
          %s528 = sand.u32 %s149, 1
          %s529 = smul.addr %s528, 8
          %s530 = scalar_lea.vmem [#allocation8], %s529
          %531 = dma.done %s527, 128
        $region64: #{tpu_custom_call.1} parent=55 // pred_fallthru
          _
      $region56: #{tpu_custom_call.1} parent=5 // pred_fallthru
        _
    $region6: #{tpu_custom_call.1} parent=1 // loop_footer
      %s24 = sadd.s32 1, %s20
    $region7: #{tpu_custom_call.1} parent=1 // loop_footer_branch
      %19 = sbr.rel target = $region3
    $region8: #{tpu_custom_call.1} parent=1 // loop_exit
      _
    %532 = vsyncpa [#allocation5], 1
    %s533 = scalar_lea.sflag [#allocation5], 1
    %534 = vsyncpa %s533, 1
    %535 = vsyncpa [#allocation6], 1
    %s536 = scalar_lea.sflag [#allocation6], 1
    %537 = vsyncpa %s536, 1
    %538 = vsyncpa [#allocation9], 1
    %s539 = scalar_lea.sflag [#allocation9], 1
    %540 = vsyncpa %s539, 1

</llo_original>
